<compile_context>
chip_gen: v7x
topology: tpu7x:2x2x1
jax: 0.10.0
libtpu: 0.0.40
codegen_flags: <defaults>
</compile_context>

<pallas_src>
import functools

import jax
import jax.numpy as jnp
from jax.experimental import pallas as pl
from jax.experimental.pallas import tpu as pltpu

EPS = 1e-5


def _head_kernel(x_ref, w_ref, gb_ref, bias_ref, o_ref, *, hw, cpt, denom):
    # x_ref:    (N, tile_k)   f32   feature tile, tile_k = cpt * HW (whole channels)
    # w_ref:    (tile_k, M)   bf16  unpadded readout-weight tile
    # gb_ref:   (2, C)        f32   SMEM: row 0 = BN gamma, row 1 = BN beta
    # bias_ref: (1, M)        f32   output biases
    # o_ref:    (N, M)        f32   resident accumulator (same block every grid step)
    f32 = jnp.float32
    k = pl.program_id(0)

    @pl.when(k == 0)
    def _init():
        o_ref[...] = jnp.broadcast_to(bias_ref[...], o_ref.shape)

    x = x_ref[...]                                         # (N, tile_k) f32

    # One pass over the tile: per-column sum / sum-of-squares (batch axis collapsed).
    col_sum = jnp.sum(x, axis=0, keepdims=True)            # (1, tile_k)
    col_sq = jnp.sum(x * x, axis=0, keepdims=True)         # (1, tile_k)

    inv_denom = f32(1.0 / denom)
    base = k * cpt                                          # first global channel in tile

    # Per-channel (static unroll, cpt is small): lane-reduce the HW-wide slice, fold the
    # BN affine into a single scale/shift, broadcast back to an HW-wide row.
    scale_rows = []
    shift_rows = []
    for c in range(cpt):
        lo = c * hw
        s = jnp.sum(col_sum[:, lo:lo + hw], axis=1, keepdims=True)   # (1, 1)
        q = jnp.sum(col_sq[:, lo:lo + hw], axis=1, keepdims=True)    # (1, 1)
        mean = s * inv_denom
        var = q * inv_denom - mean * mean                  # biased variance (PyTorch BN)
        inv_std = jax.lax.rsqrt(var + EPS)
        gamma_c = gb_ref[0, base + c]                      # SMEM scalar reads
        beta_c = gb_ref[1, base + c]
        scale = inv_std * gamma_c                          # (1, 1)
        shift = beta_c - mean * scale                      # (1, 1)
        scale_rows.append(jnp.broadcast_to(scale, (1, hw)))
        shift_rows.append(jnp.broadcast_to(shift, (1, hw)))

    scale_flat = jnp.concatenate(scale_rows, axis=1)       # (1, tile_k)
    shift_flat = jnp.concatenate(shift_rows, axis=1)       # (1, tile_k)

    # BN apply + ReLU (single fused VPU pass over the tile).
    y = jnp.maximum(x * scale_flat + shift_flat, 0.0)      # (N, tile_k) f32

    # Fused MXU contraction over this K tile (bf16 operands, f32 accumulation).
    contrib = jnp.dot(y.astype(jnp.bfloat16), w_ref[...],
                      preferred_element_type=f32)          # (N, M)
    o_ref[...] += contrib


def _pick_channels_per_tile(C, HW, N, M, budget_bytes):
    """Largest whole-channel K tile whose double-buffered footprint fits the budget."""
    legal = []
    for cpt in range(1, C + 1):
        if C % cpt:
            continue
        tile_k = cpt * HW
        if tile_k % 8:
            continue
        if cpt != C and tile_k % 128:
            continue
        legal.append(cpt)
    assert legal, "no legal channel tiling (need cpt*HW % 128 == 0 or cpt == C)"
    best = legal[0]
    for cpt in legal:
        tile_k = cpt * HW
        # 2x double-buffered x (f32) + w (bf16) streams, y temporaries (f32 + bf16 copy),
        # resident accumulator/bias, ~1 MiB slack.
        need = (2 * (N * tile_k * 4 + tile_k * M * 2)
                + N * tile_k * 6 + N * M * 4 + M * 4 + (1 << 20))
        if need <= budget_bytes:
            best = cpt
    return best


def prepare_params(w_chwm, biases, gamma, beta):
    """One-time parameter prep (hoisted out of the per-call hot path)."""
    C, H, W, M = w_chwm.shape
    K = C * H * W
    w_km = w_chwm.reshape(K, M).astype(jnp.bfloat16)               # (K, M) bf16, unpadded
    bias_1m = biases.reshape(1, M).astype(jnp.float32)             # (1, M)
    gb = jnp.stack([gamma, beta], axis=0).astype(jnp.float32)      # (2, C)
    return w_km, bias_1m, gb


def make_inception_head(N, C, H, W, M, *, channels_per_tile=None,
                        vmem_budget_bytes=12 << 20):
    """Builds a jitted head: (x_nchw, w_km_bf16, gb, bias_1m) -> (N, M) f32."""
    HW = H * W
    K = C * HW
    cpt = (channels_per_tile if channels_per_tile is not None
           else _pick_channels_per_tile(C, HW, N, M, vmem_budget_bytes))
    assert C % cpt == 0
    tile_k = cpt * HW
    assert tile_k % 8 == 0
    assert cpt == C or tile_k % 128 == 0
    steps = C // cpt
    denom = float(N * HW)

    kernel = functools.partial(_head_kernel, hw=HW, cpt=cpt, denom=denom)

    grid_spec = pltpu.PrefetchScalarGridSpec(
        num_scalar_prefetch=0,
        grid=(steps,),
        in_specs=[
            pl.BlockSpec((N, tile_k), lambda k: (0, k)),                 # x tile
            pl.BlockSpec((tile_k, M), lambda k: (k, 0)),                 # w tile (unpadded)
            pl.BlockSpec(memory_space=pltpu.MemorySpace.SMEM),           # gamma/beta table
            pl.BlockSpec((1, M), lambda k: (0, 0)),                      # bias
        ],
        out_specs=pl.BlockSpec((N, M), lambda k: (0, 0)),                # resident accum
    )

    call = pl.pallas_call(
        kernel,
        out_shape=jax.ShapeDtypeStruct((N, M), jnp.float32),
        grid_spec=grid_spec,
        compiler_params=pltpu.CompilerParams(
            dimension_semantics=("arbitrary",),   # K reduction axis
            vmem_limit_bytes=32 << 20,
        ),
    )

    @jax.jit
    def head(x_nchw, w_km_bf16, gb, bias_1m):
        x2 = x_nchw.reshape(N, K).astype(jnp.float32)   # pure view reshape, no kernel copy
        return call(x2, w_km_bf16, gb, bias_1m)

    return head


def reference(x_nchw, w_chwm, biases, gamma, beta):
    mean = jnp.mean(x_nchw, axis=(0, 2, 3), keepdims=True)
    var = jnp.mean((x_nchw - mean) ** 2, axis=(0, 2, 3), keepdims=True)
    y = (x_nchw - mean) * jax.lax.rsqrt(var + EPS)
    y = y * gamma.reshape(1, -1, 1, 1) + beta.reshape(1, -1, 1, 1)
    y = jnp.maximum(y, 0.0)
    out = jnp.tensordot(y, w_chwm, [[1, 2, 3], [0, 1, 2]])
    return out + biases


if __name__ == "__main__":
    # Small shapes consistent with the module: feature map (N, C, H, W), num_neurons = 43.
    N, C, H, W = 2, 16, 16, 16
    NUM_NEURONS = 43

    key = jax.random.PRNGKey(0)
    kx, kw, kb, kg, kbeta = jax.random.split(key, 5)

    x = jax.random.normal(kx, (N, C, H, W), dtype=jnp.float32)
    # Parameters (deterministic in-script init; shapes from __init__):
    w = jax.random.normal(kw, (C, H, W, NUM_NEURONS), dtype=jnp.float32)      # self.w
    biases = jax.random.normal(kb, (1, NUM_NEURONS), dtype=jnp.float32)       # self.biases
    # BN affine (PyTorch defaults are 1/0; perturb slightly to exercise the path).
    gamma = 1.0 + 0.1 * jax.random.normal(kg, (C,), dtype=jnp.float32)        # BN1 weight
    beta = 0.1 * jax.random.normal(kbeta, (C,), dtype=jnp.float32)            # BN1 bias

    # One-time parameter prep (weight reshape + bf16 cast hoisted out of the hot path).
    w_km, bias_1m, gb = prepare_params(w, biases, gamma, beta)

    # channels_per_tile=4 -> 4 grid steps over the K reduction (exercises the
    # accumulate-across-"arbitrary"-axis path; production sizes use the auto picker).
    head = make_inception_head(N, C, H, W, NUM_NEURONS, channels_per_tile=4)

    out = jax.block_until_ready(head(x, w_km, gb, bias_1m))
    ref = jax.block_until_ready(reference(x, w, biases, gamma, beta))

    assert out.shape == (N, NUM_NEURONS)
    err = float(jnp.max(jnp.abs(out - ref)))
    out_scale = float(jnp.max(jnp.abs(ref)))
    # bf16 MXU operands for the K=4096 contraction: compare relative to output scale
    # (expected relative error ~3e-3; 2e-2 gives a comfortable margin).
    assert err <= 2e-2 * out_scale, f"max abs err {err} vs output scale {out_scale}"
    print("KERNEL_OK")
</pallas_src>

<mosaic_0001>
module attributes {stable_mosaic.version = 11 : i64} {
  func.func @_head_kernel(%arg0: i32, %arg1: memref<2x1024xf32, #tpu.memory_space<vmem>>, %arg2: memref<1024x43xbf16, #tpu.memory_space<vmem>>, %arg3: memref<2x16xf32, #tpu.memory_space<smem>>, %arg4: memref<1x43xf32, #tpu.memory_space<vmem>>, %arg5: memref<2x43xf32, #tpu.memory_space<vmem>>) attributes {dimension_semantics = [#tpu.dimension_semantics<arbitrary>], iteration_bounds = array<i64: 4>, scalar_prefetch = 0 : i64, scratch_operands = 0 : i64, tpu.core_type = #tpu.core_type<tc>, window_params = [{transform_indices = @transform_0, window_bounds = array<i64: 2, 1024>}, {transform_indices = @transform_1, window_bounds = array<i64: 1024, 43>}, {transform_indices = @transform_2, window_bounds = array<i64: 2, 16>}, {pipeline_mode = #tpu.pipeline_mode<synchronous>, transform_indices = @transform_3, window_bounds = array<i64: 1, 43>}, {pipeline_mode = #tpu.pipeline_mode<synchronous>, transform_indices = @transform_4, window_bounds = array<i64: 2, 43>}]} {
    %c0_i32 = arith.constant 0 : i32
    %0 = arith.cmpi eq, %arg0, %c0_i32 : i32
    %1 = arith.extui %0 : i1 to i32
    %c0_i32_0 = arith.constant 0 : i32
    %2 = arith.cmpi ne, %1, %c0_i32_0 : i32
    scf.if %2 {
      %c0_43 = arith.constant 0 : index
      %c0_44 = arith.constant 0 : index
      %144 = vector.load %arg4[%c0_43, %c0_44] : memref<1x43xf32, #tpu.memory_space<vmem>>, vector<1x43xf32>
      %145 = vector.shape_cast %144 : vector<1x43xf32> to vector<1x43xf32>
      %146 = vector.broadcast %145 : vector<1x43xf32> to vector<2x43xf32>
      %c0_45 = arith.constant 0 : index
      %c0_46 = arith.constant 0 : index
      %147 = vector.load %arg5[%c0_45, %c0_46] : memref<2x43xf32, #tpu.memory_space<vmem>>, vector<2x43xf32>
      tpu.vector_store %arg5[%c0_45, %c0_46], %146 {strides = array<i32>} : memref<2x43xf32, #tpu.memory_space<vmem>>, vector<2x43xf32>,
    } else {
    }
    %c0 = arith.constant 0 : index
    %c0_1 = arith.constant 0 : index
    %3 = vector.load %arg1[%c0, %c0_1] : memref<2x1024xf32, #tpu.memory_space<vmem>>, vector<2x1024xf32>
    %cst = arith.constant dense<0.000000e+00> : vector<1024xf32>
    %4 = vector.multi_reduction <add>, %3, %cst [0] : vector<2x1024xf32> to vector<1024xf32>
    %5 = vector.shape_cast %4 : vector<1024xf32> to vector<1x1024xf32>
    %6 = arith.mulf %3, %3 : vector<2x1024xf32>
    %cst_2 = arith.constant dense<0.000000e+00> : vector<1024xf32>
    %7 = vector.multi_reduction <add>, %6, %cst_2 [0] : vector<2x1024xf32> to vector<1024xf32>
    %8 = vector.shape_cast %7 : vector<1024xf32> to vector<1x1024xf32>
    %c4_i32 = arith.constant 4 : i32
    %9 = arith.muli %arg0, %c4_i32 : i32
    %10 = vector.extract_strided_slice %5 {offsets = [0, 0], sizes = [1, 256], strides = [1, 1]} : vector<1x1024xf32> to vector<1x256xf32>
    %cst_3 = arith.constant dense<0.000000e+00> : vector<1xf32>
    %11 = vector.multi_reduction <add>, %10, %cst_3 [1] : vector<1x256xf32> to vector<1xf32>
    %12 = vector.shape_cast %11 : vector<1xf32> to vector<1x1xf32>
    %13 = vector.extract_strided_slice %8 {offsets = [0, 0], sizes = [1, 256], strides = [1, 1]} : vector<1x1024xf32> to vector<1x256xf32>
    %cst_4 = arith.constant dense<0.000000e+00> : vector<1xf32>
    %14 = vector.multi_reduction <add>, %13, %cst_4 [1] : vector<1x256xf32> to vector<1xf32>
    %15 = vector.shape_cast %14 : vector<1xf32> to vector<1x1xf32>
    %cst_5 = arith.constant 0.001953125 : f32
    %16 = vector.broadcast %cst_5 : f32 to vector<1x1xf32>
    %17 = arith.mulf %12, %16 : vector<1x1xf32>
    %cst_6 = arith.constant 0.001953125 : f32
    %18 = vector.broadcast %cst_6 : f32 to vector<1x1xf32>
    %19 = arith.mulf %15, %18 : vector<1x1xf32>
    %20 = arith.mulf %17, %17 : vector<1x1xf32>
    %21 = arith.subf %19, %20 : vector<1x1xf32>
    %cst_7 = arith.constant 9.99999974E-6 : f32
    %22 = vector.broadcast %cst_7 : f32 to vector<1x1xf32>
    %23 = arith.addf %21, %22 : vector<1x1xf32>
    %24 = math.rsqrt %23 : vector<1x1xf32>
    %c0_i32_8 = arith.constant 0 : i32
    %25 = arith.addi %9, %c0_i32_8 : i32
    %c0_9 = arith.constant 0 : index
    %26 = arith.index_cast %25 : i32 to index
    %27 = memref.load %arg3[%c0_9, %26] : memref<2x16xf32, #tpu.memory_space<smem>>
    %c0_i32_10 = arith.constant 0 : i32
    %28 = arith.addi %9, %c0_i32_10 : i32
    %c1 = arith.constant 1 : index
    %29 = arith.index_cast %28 : i32 to index
    %30 = memref.load %arg3[%c1, %29] : memref<2x16xf32, #tpu.memory_space<smem>>
    %31 = vector.broadcast %27 : f32 to vector<1x1xf32>
    %32 = arith.mulf %24, %31 : vector<1x1xf32>
    %33 = arith.mulf %17, %32 : vector<1x1xf32>
    %34 = vector.broadcast %30 : f32 to vector<1x1xf32>
    %35 = arith.subf %34, %33 : vector<1x1xf32>
    %36 = vector.shape_cast %32 : vector<1x1xf32> to vector<1x1xf32>
    %37 = vector.broadcast %36 : vector<1x1xf32> to vector<1x256xf32>
    %38 = vector.shape_cast %35 : vector<1x1xf32> to vector<1x1xf32>
    %39 = vector.broadcast %38 : vector<1x1xf32> to vector<1x256xf32>
    %40 = vector.extract_strided_slice %5 {offsets = [0, 256], sizes = [1, 256], strides = [1, 1]} : vector<1x1024xf32> to vector<1x256xf32>
    %cst_11 = arith.constant dense<0.000000e+00> : vector<1xf32>
    %41 = vector.multi_reduction <add>, %40, %cst_11 [1] : vector<1x256xf32> to vector<1xf32>
    %42 = vector.shape_cast %41 : vector<1xf32> to vector<1x1xf32>
    %43 = vector.extract_strided_slice %8 {offsets = [0, 256], sizes = [1, 256], strides = [1, 1]} : vector<1x1024xf32> to vector<1x256xf32>
    %cst_12 = arith.constant dense<0.000000e+00> : vector<1xf32>
    %44 = vector.multi_reduction <add>, %43, %cst_12 [1] : vector<1x256xf32> to vector<1xf32>
    %45 = vector.shape_cast %44 : vector<1xf32> to vector<1x1xf32>
    %cst_13 = arith.constant 0.001953125 : f32
    %46 = vector.broadcast %cst_13 : f32 to vector<1x1xf32>
    %47 = arith.mulf %42, %46 : vector<1x1xf32>
    %cst_14 = arith.constant 0.001953125 : f32
    %48 = vector.broadcast %cst_14 : f32 to vector<1x1xf32>
    %49 = arith.mulf %45, %48 : vector<1x1xf32>
    %50 = arith.mulf %47, %47 : vector<1x1xf32>
    %51 = arith.subf %49, %50 : vector<1x1xf32>
    %cst_15 = arith.constant 9.99999974E-6 : f32
    %52 = vector.broadcast %cst_15 : f32 to vector<1x1xf32>
    %53 = arith.addf %51, %52 : vector<1x1xf32>
    %54 = math.rsqrt %53 : vector<1x1xf32>
    %c1_i32 = arith.constant 1 : i32
    %55 = arith.addi %9, %c1_i32 : i32
    %c0_16 = arith.constant 0 : index
    %56 = arith.index_cast %55 : i32 to index
    %57 = memref.load %arg3[%c0_16, %56] : memref<2x16xf32, #tpu.memory_space<smem>>
    %c1_i32_17 = arith.constant 1 : i32
    %58 = arith.addi %9, %c1_i32_17 : i32
    %c1_18 = arith.constant 1 : index
    %59 = arith.index_cast %58 : i32 to index
    %60 = memref.load %arg3[%c1_18, %59] : memref<2x16xf32, #tpu.memory_space<smem>>
    %61 = vector.broadcast %57 : f32 to vector<1x1xf32>
    %62 = arith.mulf %54, %61 : vector<1x1xf32>
    %63 = arith.mulf %47, %62 : vector<1x1xf32>
    %64 = vector.broadcast %60 : f32 to vector<1x1xf32>
    %65 = arith.subf %64, %63 : vector<1x1xf32>
    %66 = vector.shape_cast %62 : vector<1x1xf32> to vector<1x1xf32>
    %67 = vector.broadcast %66 : vector<1x1xf32> to vector<1x256xf32>
    %68 = vector.shape_cast %65 : vector<1x1xf32> to vector<1x1xf32>
    %69 = vector.broadcast %68 : vector<1x1xf32> to vector<1x256xf32>
    %70 = vector.extract_strided_slice %5 {offsets = [0, 512], sizes = [1, 256], strides = [1, 1]} : vector<1x1024xf32> to vector<1x256xf32>
    %cst_19 = arith.constant dense<0.000000e+00> : vector<1xf32>
    %71 = vector.multi_reduction <add>, %70, %cst_19 [1] : vector<1x256xf32> to vector<1xf32>
    %72 = vector.shape_cast %71 : vector<1xf32> to vector<1x1xf32>
    %73 = vector.extract_strided_slice %8 {offsets = [0, 512], sizes = [1, 256], strides = [1, 1]} : vector<1x1024xf32> to vector<1x256xf32>
    %cst_20 = arith.constant dense<0.000000e+00> : vector<1xf32>
    %74 = vector.multi_reduction <add>, %73, %cst_20 [1] : vector<1x256xf32> to vector<1xf32>
    %75 = vector.shape_cast %74 : vector<1xf32> to vector<1x1xf32>
    %cst_21 = arith.constant 0.001953125 : f32
    %76 = vector.broadcast %cst_21 : f32 to vector<1x1xf32>
    %77 = arith.mulf %72, %76 : vector<1x1xf32>
    %cst_22 = arith.constant 0.001953125 : f32
    %78 = vector.broadcast %cst_22 : f32 to vector<1x1xf32>
    %79 = arith.mulf %75, %78 : vector<1x1xf32>
    %80 = arith.mulf %77, %77 : vector<1x1xf32>
    %81 = arith.subf %79, %80 : vector<1x1xf32>
    %cst_23 = arith.constant 9.99999974E-6 : f32
    %82 = vector.broadcast %cst_23 : f32 to vector<1x1xf32>
    %83 = arith.addf %81, %82 : vector<1x1xf32>
    %84 = math.rsqrt %83 : vector<1x1xf32>
    %c2_i32 = arith.constant 2 : i32
    %85 = arith.addi %9, %c2_i32 : i32
    %c0_24 = arith.constant 0 : index
    %86 = arith.index_cast %85 : i32 to index
    %87 = memref.load %arg3[%c0_24, %86] : memref<2x16xf32, #tpu.memory_space<smem>>
    %c2_i32_25 = arith.constant 2 : i32
    %88 = arith.addi %9, %c2_i32_25 : i32
    %c1_26 = arith.constant 1 : index
    %89 = arith.index_cast %88 : i32 to index
    %90 = memref.load %arg3[%c1_26, %89] : memref<2x16xf32, #tpu.memory_space<smem>>
    %91 = vector.broadcast %87 : f32 to vector<1x1xf32>
    %92 = arith.mulf %84, %91 : vector<1x1xf32>
    %93 = arith.mulf %77, %92 : vector<1x1xf32>
    %94 = vector.broadcast %90 : f32 to vector<1x1xf32>
    %95 = arith.subf %94, %93 : vector<1x1xf32>
    %96 = vector.shape_cast %92 : vector<1x1xf32> to vector<1x1xf32>
    %97 = vector.broadcast %96 : vector<1x1xf32> to vector<1x256xf32>
    %98 = vector.shape_cast %95 : vector<1x1xf32> to vector<1x1xf32>
    %99 = vector.broadcast %98 : vector<1x1xf32> to vector<1x256xf32>
    %100 = vector.extract_strided_slice %5 {offsets = [0, 768], sizes = [1, 256], strides = [1, 1]} : vector<1x1024xf32> to vector<1x256xf32>
    %cst_27 = arith.constant dense<0.000000e+00> : vector<1xf32>
    %101 = vector.multi_reduction <add>, %100, %cst_27 [1] : vector<1x256xf32> to vector<1xf32>
    %102 = vector.shape_cast %101 : vector<1xf32> to vector<1x1xf32>
    %103 = vector.extract_strided_slice %8 {offsets = [0, 768], sizes = [1, 256], strides = [1, 1]} : vector<1x1024xf32> to vector<1x256xf32>
    %cst_28 = arith.constant dense<0.000000e+00> : vector<1xf32>
    %104 = vector.multi_reduction <add>, %103, %cst_28 [1] : vector<1x256xf32> to vector<1xf32>
    %105 = vector.shape_cast %104 : vector<1xf32> to vector<1x1xf32>
    %cst_29 = arith.constant 0.001953125 : f32
    %106 = vector.broadcast %cst_29 : f32 to vector<1x1xf32>
    %107 = arith.mulf %102, %106 : vector<1x1xf32>
    %cst_30 = arith.constant 0.001953125 : f32
    %108 = vector.broadcast %cst_30 : f32 to vector<1x1xf32>
    %109 = arith.mulf %105, %108 : vector<1x1xf32>
    %110 = arith.mulf %107, %107 : vector<1x1xf32>
    %111 = arith.subf %109, %110 : vector<1x1xf32>
    %cst_31 = arith.constant 9.99999974E-6 : f32
    %112 = vector.broadcast %cst_31 : f32 to vector<1x1xf32>
    %113 = arith.addf %111, %112 : vector<1x1xf32>
    %114 = math.rsqrt %113 : vector<1x1xf32>
    %c3_i32 = arith.constant 3 : i32
    %115 = arith.addi %9, %c3_i32 : i32
    %c0_32 = arith.constant 0 : index
    %116 = arith.index_cast %115 : i32 to index
    %117 = memref.load %arg3[%c0_32, %116] : memref<2x16xf32, #tpu.memory_space<smem>>
    %c3_i32_33 = arith.constant 3 : i32
    %118 = arith.addi %9, %c3_i32_33 : i32
    %c1_34 = arith.constant 1 : index
    %119 = arith.index_cast %118 : i32 to index
    %120 = memref.load %arg3[%c1_34, %119] : memref<2x16xf32, #tpu.memory_space<smem>>
    %121 = vector.broadcast %117 : f32 to vector<1x1xf32>
    %122 = arith.mulf %114, %121 : vector<1x1xf32>
    %123 = arith.mulf %107, %122 : vector<1x1xf32>
    %124 = vector.broadcast %120 : f32 to vector<1x1xf32>
    %125 = arith.subf %124, %123 : vector<1x1xf32>
    %126 = vector.shape_cast %122 : vector<1x1xf32> to vector<1x1xf32>
    %127 = vector.broadcast %126 : vector<1x1xf32> to vector<1x256xf32>
    %128 = vector.shape_cast %125 : vector<1x1xf32> to vector<1x1xf32>
    %129 = vector.broadcast %128 : vector<1x1xf32> to vector<1x256xf32>
    %130 = tpu.concatenate %37, %67, %97, %127 in 1 : vector<1x256xf32>, vector<1x256xf32>, vector<1x256xf32>, vector<1x256xf32> -> vector<1x1024xf32>
    %131 = tpu.concatenate %39, %69, %99, %129 in 1 : vector<1x256xf32>, vector<1x256xf32>, vector<1x256xf32>, vector<1x256xf32> -> vector<1x1024xf32>
    %132 = vector.broadcast %130 : vector<1x1024xf32> to vector<2x1024xf32>
    %133 = arith.mulf %3, %132 : vector<2x1024xf32>
    %134 = vector.broadcast %131 : vector<1x1024xf32> to vector<2x1024xf32>
    %135 = arith.addf %133, %134 : vector<2x1024xf32>
    %cst_35 = arith.constant 0.000000e+00 : f32
    %136 = vector.broadcast %cst_35 : f32 to vector<2x1024xf32>
    %137 = arith.maximumf %135, %136 : vector<2x1024xf32>
    %138 = arith.truncf %137 : vector<2x1024xf32> to vector<2x1024xbf16>
    %c0_36 = arith.constant 0 : index
    %c0_37 = arith.constant 0 : index
    %139 = vector.load %arg2[%c0_36, %c0_37] : memref<1024x43xbf16, #tpu.memory_space<vmem>>, vector<1024x43xbf16>
    %cst_38 = arith.constant dense<0.000000e+00> : vector<2x43xf32>
    %140 = tpu.matmul %138, %139, %cst_38 {dimension_numbers = #tpu.dot_dimension_numbers<[1], [0], [0], [1], [0, 0, 1, 1], [], []>} : vector<2x1024xbf16>, vector<1024x43xbf16>, vector<2x43xf32> -> vector<2x43xf32>
    %c0_39 = arith.constant 0 : index
    %c0_40 = arith.constant 0 : index
    %141 = vector.load %arg5[%c0_39, %c0_40] : memref<2x43xf32, #tpu.memory_space<vmem>>, vector<2x43xf32>
    %142 = arith.addf %141, %140 : vector<2x43xf32>
    %c0_41 = arith.constant 0 : index
    %c0_42 = arith.constant 0 : index
    %143 = vector.load %arg5[%c0_41, %c0_42] : memref<2x43xf32, #tpu.memory_space<vmem>>, vector<2x43xf32>
    tpu.vector_store %arg5[%c0_41, %c0_42], %142 {strides = array<i32>} : memref<2x43xf32, #tpu.memory_space<vmem>>, vector<2x43xf32>,
    return
  }
  func.func @transform_0(%arg0: i32) -> (i32, i32) {
    %c0_i32 = arith.constant 0 : i32
    %c0_i32_0 = arith.constant 0 : i32
    return %c0_i32, %arg0 : i32, i32
  }
  func.func @transform_1(%arg0: i32) -> (i32, i32) {
    %c0_i32 = arith.constant 0 : i32
    %c0_i32_0 = arith.constant 0 : i32
    return %arg0, %c0_i32 : i32, i32
  }
  func.func @transform_2(%arg0: i32) -> (i32, i32) {
    %c0_i32 = arith.constant 0 : i32
    %c0_i32_0 = arith.constant 0 : i32
    %c0_i32_1 = arith.constant 0 : i32
    return %c0_i32, %c0_i32_0 : i32, i32
  }
  func.func @transform_3(%arg0: i32) -> (i32, i32) {
    %c0_i32 = arith.constant 0 : i32
    %c0_i32_0 = arith.constant 0 : i32
    %c0_i32_1 = arith.constant 0 : i32
    return %c0_i32, %c0_i32_0 : i32, i32
  }
  func.func @transform_4(%arg0: i32) -> (i32, i32) {
    %c0_i32 = arith.constant 0 : i32
    %c0_i32_0 = arith.constant 0 : i32
    %c0_i32_1 = arith.constant 0 : i32
    return %c0_i32, %c0_i32_0 : i32, i32
  }
}

</mosaic_0001>

<llo_original>
// kernel: head.1
$region0: #{head.1}
  #allocation0 [shape = 'u32[]', space=smem, size = 0x4, offset = 0x4, fixed_abs, tag = 'smem constant byte address 0x4 - core index']
  #allocation1 [shape = 'u32[144,128]{1,0:T(1,128)}', space=vmem, size = 0x12000, scoped, tag = 'internal scratch']
  %s0 = inlined_call_operand.vmem [shape: f32[2,4096], index: 0, kind: input, shape index: {}]
  %s1 = inlined_call_operand.vmem [shape: bf16[4096,43], index: 1, kind: input, shape index: {}]
  %s2 = inlined_call_operand.vmem [shape: f32[2,16], index: 2, kind: input, shape index: {}]
  %s3 = inlined_call_operand.vmem [shape: f32[1,43], index: 3, kind: input, shape index: {}]
  %s4 = inlined_call_operand.hbm [shape: f32[2,43], index: 4, kind: output, shape index: {}]
  %s5 = sld [smem:[#allocation0]]
  $region57: #{head.1} parent=0
    _
  %s7 = ssub.s32 1, %s5
  %s8 = scalar_select 0, %s7, %s5
  $region1: #{head.1} parent=0
    #allocation2 [shape = 'u8[1024]{0}', space=smem, size = 0x400, scoped, tag = 'input window, operand 2, single buffered']
    #allocation3 [shape = 's32[2]{0}', space=sflag, size = 0x8, scoped, tag = 'scoped memory for head.1']
    #allocation4 [shape = 's32[2]{0}', space=sflag, size = 0x8, scoped, tag = 'scoped memory for head.1']
    #allocation5 [shape = 'u8[1024]{0}', space=vmem, size = 0x400, scoped, tag = 'output window, operand 0, single buffered']
    %9 = vsyncpa [#allocation4], 0
    %10 = vsyncpa [#allocation3], 0
    loop: start=0, step=1, limit=6
    $region2: #{head.1} parent=1 // loop_pre_header
      _
    $region3: #{head.1} parent=1 // loop_header
      %s12 = sphi 0, %s16
      %p13 = scmp.ge.s32.totalorder %s12, 6
      %s22 = sphi 0, %s24
      %s25 = sphi 0, %s22
      %s26 = sphi 0, %s25
      %s42 = sphi 0, %s26
      %s48 = sphi 0, %s50
      %s51 = sphi 0, %s48
      %s52 = sphi 0, %s51
      %s68 = sphi 0, %s52
      %s72 = sphi 0, %s72
      %s74 = sphi 0, %s72
      %s75 = sphi 0, %s74
      %s89 = sphi 0, %s75
      %s93 = sphi 0, %s93
      %s95 = sphi 0, %s93
      %s96 = sphi 0, %s95
      %s110 = sphi 0, %s96
      %s114 = sphi 0, %s114
      %s116 = sphi 0, %s114
      %s117 = sphi 0, %s116
      %s131 = sphi 0, %s117
    $region4: #{head.1} parent=1 // loop_header_branch
      %15 = sbr.rel (%p13) target = $region8
    $region5: #{head.1} parent=1 // loop_body
      %s17 = ssub.s32 %s12, 1
      %s18 = ssub.s32 %s12, 2
      %s19 = sadd.s32 %s12, 1
      %s20 = ssub.s32 %s12, %s19
      %p21 = scmp.eq.s32.totalorder %s20, 0
      %s23 = sadd.s32 %s22, 1
      %s24 = scalar_select %p21, %s22, %s23
      %p27 = pneg %p21
      %p28 = scmp.eq.s32.totalorder %s12, 3
      %p29 = por %p27, %p28
      %p30 = scmp.ne.s32.totalorder %s22, %s25
      %p31 = scmp.eq.s32.totalorder %s12, 0
      %p32 = por %p30, %p31
      %p33 = scmp.ne.s32.totalorder %s22, %s25
      %p34 = scmp.eq.s32.totalorder %s17, 3
      %p35 = por %p33, %p34
      %p36 = scmp.ne.s32.totalorder %s25, %s26
      %p37 = scmp.eq.s32.totalorder %s17, 0
      %p38 = por %p36, %p37
      %p39 = scmp.ne.s32.totalorder %s25, %s26
      %p40 = scmp.eq.s32.totalorder %s18, 3
      %p41 = por %p39, %p40
      %p43 = scmp.ne.s32.totalorder %s26, %s42
      %p44 = scmp.eq.s32.totalorder %s18, 0
      %p45 = por %p43, %p44
      %s46 = ssub.s32 %s12, %s19
      %p47 = scmp.eq.s32.totalorder %s46, 0
      %s49 = sadd.s32 %s48, 1
      %s50 = scalar_select %p47, %s48, %s49
      %p53 = pneg %p47
      %p54 = scmp.eq.s32.totalorder %s12, 3
      %p55 = por %p53, %p54
      %p56 = scmp.ne.s32.totalorder %s48, %s51
      %p57 = scmp.eq.s32.totalorder %s12, 0
      %p58 = por %p56, %p57
      %p59 = scmp.ne.s32.totalorder %s48, %s51
      %p60 = scmp.eq.s32.totalorder %s17, 3
      %p61 = por %p59, %p60
      %p62 = scmp.ne.s32.totalorder %s51, %s52
      %p63 = scmp.eq.s32.totalorder %s17, 0
      %p64 = por %p62, %p63
      %p65 = scmp.ne.s32.totalorder %s51, %s52
      %p66 = scmp.eq.s32.totalorder %s18, 3
      %p67 = por %p65, %p66
      %p69 = scmp.ne.s32.totalorder %s52, %s68
      %p70 = scmp.eq.s32.totalorder %s18, 0
      %p71 = por %p69, %p70
      %s73 = sadd.s32 %s72, 1
      %p76 = scmp.eq.s32.totalorder %s12, 3
      %p77 = scmp.ne.s32.totalorder %s72, %s74
      %p78 = scmp.eq.s32.totalorder %s12, 0
      %p79 = por %p77, %p78
      %p80 = scmp.ne.s32.totalorder %s72, %s74
      %p81 = scmp.eq.s32.totalorder %s17, 3
      %p82 = por %p80, %p81
      %p83 = scmp.ne.s32.totalorder %s74, %s75
      %p84 = scmp.eq.s32.totalorder %s17, 0
      %p85 = por %p83, %p84
      %p86 = scmp.ne.s32.totalorder %s74, %s75
      %p87 = scmp.eq.s32.totalorder %s18, 3
      %p88 = por %p86, %p87
      %p90 = scmp.ne.s32.totalorder %s75, %s89
      %p91 = scmp.eq.s32.totalorder %s18, 0
      %p92 = por %p90, %p91
      %s94 = sadd.s32 %s93, 1
      %p97 = scmp.eq.s32.totalorder %s12, 3
      %p98 = scmp.ne.s32.totalorder %s93, %s95
      %p99 = scmp.eq.s32.totalorder %s12, 0
      %p100 = por %p98, %p99
      %p101 = scmp.ne.s32.totalorder %s93, %s95
      %p102 = scmp.eq.s32.totalorder %s17, 3
      %p103 = por %p101, %p102
      %p104 = scmp.ne.s32.totalorder %s95, %s96
      %p105 = scmp.eq.s32.totalorder %s17, 0
      %p106 = por %p104, %p105
      %p107 = scmp.ne.s32.totalorder %s95, %s96
      %p108 = scmp.eq.s32.totalorder %s18, 3
      %p109 = por %p107, %p108
      %p111 = scmp.ne.s32.totalorder %s96, %s110
      %p112 = scmp.eq.s32.totalorder %s18, 0
      %p113 = por %p111, %p112
      %s115 = sadd.s32 %s114, 1
      %p118 = scmp.eq.s32.totalorder %s12, 3
      %p119 = scmp.ne.s32.totalorder %s114, %s116
      %p120 = scmp.eq.s32.totalorder %s12, 0
      %p121 = por %p119, %p120
      %p122 = scmp.ne.s32.totalorder %s114, %s116
      %p123 = scmp.eq.s32.totalorder %s17, 3
      %p124 = por %p122, %p123
      %p125 = scmp.ne.s32.totalorder %s116, %s117
      %p126 = scmp.eq.s32.totalorder %s17, 0
      %p127 = por %p125, %p126
      %p128 = scmp.ne.s32.totalorder %s116, %s117
      %p129 = scmp.eq.s32.totalorder %s18, 3
      %p130 = por %p128, %p129
      %p132 = scmp.ne.s32.totalorder %s117, %s131
      %p133 = scmp.eq.s32.totalorder %s18, 0
      %p134 = por %p132, %p133
      %p135 = scmp.le.s32.totalorder 1, %s12
      %p136 = scmp.lt.s32.totalorder %s12, 5
      %p137 = pnand %p135, %p136
      %p138 = pneg %p137
      // Predicated region
      $region9: #{head.1} parent=5 // pred_check
        _
      $region10: #{head.1} parent=5 // pred_check_branch
        %140 = sbr.rel (%p137) target = $region12
      $region11: #{head.1} parent=5 // pred_region
        %s141 = ssub.s32 %s12, 1
        // Predicated region
        $region13: #{head.1} parent=11 // pred_check
          %p142 = pneg %p85
        $region14: #{head.1} parent=11 // pred_check_branch
          %144 = sbr.rel (%p142) target = $region16
        $region15: #{head.1} parent=11 // pred_region
          %s146 = ssub.s32 32, 32
          %147 = vsyncadd [#allocation4], %s146
          %s149 = sshll.u32 %s2, 4
          %s150 = int_to_ptr.vmem [resolvable:$true] %s149
          %152 = dma.vmem_to_smem %s150, 32, [#allocation2], [#allocation4]
        $region16: #{head.1} parent=11 // pred_fallthru
          _
        // Predicated region
        $region17: #{head.1} parent=11 // pred_check
          %p153 = pneg %p106
        $region18: #{head.1} parent=11 // pred_check_branch
          %155 = sbr.rel (%p153) target = $region20
        $region19: #{head.1} parent=11 // pred_region
          _
        $region20: #{head.1} parent=11 // pred_fallthru
          _
      $region12: #{head.1} parent=5 // pred_fallthru
        _
      %p156 = scmp.lt.s32.totalorder %s12, 4
      // Predicated region
      $region21: #{head.1} parent=5 // pred_check
        %p157 = pneg %p156
      $region22: #{head.1} parent=5 // pred_check_branch
        %159 = sbr.rel (%p157) target = $region24
      $region23: #{head.1} parent=5 // pred_region
        // Predicated region
        $region25: #{head.1} parent=23 // pred_check
          %p160 = pneg %p32
        $region26: #{head.1} parent=23 // pred_check_branch
          %162 = sbr.rel (%p160) target = $region28
        $region27: #{head.1} parent=23 // pred_region
          %s163 = smul.u32 8, %s12
          %p164 = scmp.lt.s32.totalorder %s163, 31
          %s165 = scalar_select %p164, %s163, 31
          %s166 = smul.addr %s165, 2
          %s167 = scalar_lea.vmem %s0, %s166
          %s168 = smul.u32 8, %s12
        $region28: #{head.1} parent=23 // pred_fallthru
          _
        // Predicated region
        $region29: #{head.1} parent=23 // pred_check
          %p169 = pneg %p58
        $region30: #{head.1} parent=23 // pred_check_branch
          %171 = sbr.rel (%p169) target = $region32
        $region31: #{head.1} parent=23 // pred_region
          %s172 = smul.u32 128, %s12
          %p173 = scmp.lt.s32.totalorder %s172, 511
          %s174 = scalar_select %p173, %s172, 511
          %s175 = smul.addr %s174, 4
          %s176 = scalar_lea.vmem %s1, %s175
          %s177 = smul.u32 128, %s12
        $region32: #{head.1} parent=23 // pred_fallthru
          _
      $region24: #{head.1} parent=5 // pred_fallthru
        _
      %p178 = scmp.le.s32.totalorder 1, %s12
      %p179 = scmp.lt.s32.totalorder %s12, 5
      %p180 = pnand %p178, %p179
      %p181 = pneg %p180
      // Predicated region
      $region33: #{head.1} parent=5 // pred_check
        _
      $region34: #{head.1} parent=5 // pred_check_branch
        %183 = sbr.rel (%p180) target = $region36
      $region35: #{head.1} parent=5 // pred_region
        %s184 = ssub.s32 %s12, 1
        // Predicated region
        $region37: #{head.1} parent=35 // pred_check
          %p185 = pneg %p85
        $region38: #{head.1} parent=35 // pred_check_branch
          %187 = sbr.rel (%p185) target = $region40
        $region39: #{head.1} parent=35 // pred_region
          %188 = dma.done [#allocation4], 32
        $region40: #{head.1} parent=35 // pred_fallthru
          _
        %189 = sfence
        %s190 = smul.u32 8, %s17
        %p191 = scmp.lt.s32.totalorder %s190, 31
        %s192 = scalar_select %p191, %s190, 31
        %s193 = smul.addr %s192, 2
        %s194 = scalar_lea.vmem %s0, %s193
        %p195 = pneg %p38
        %p196 = pneg %p35
        %s197 = smul.u32 128, %s17
        %p198 = scmp.lt.s32.totalorder %s197, 511
        %s199 = scalar_select %p198, %s197, 511
        %s200 = smul.addr %s199, 4
        %s201 = scalar_lea.vmem %s1, %s200
        %p202 = pneg %p64
        %p203 = pneg %p61
        %p204 = pneg %p85
        %p205 = pneg %p82
        %p206 = pneg %p106
        %p207 = pneg %p103
        %p208 = pneg %p127
        %p209 = pneg %p124
        %s210 = smul.u32 8, %s17
        %p211 = scmp.lt.s32.totalorder %s210, 31
        %s212 = scalar_select %p211, %s210, 31
        %s213 = smul.addr %s212, 2
        %s214 = scalar_lea.vmem %s0, %s213
        %s215 = smul.u32 8, %s17
        %s216 = smul.u32 128, %s17
        %p217 = scmp.lt.s32.totalorder %s216, 511
        %s218 = scalar_select %p217, %s216, 511
        %s219 = smul.addr %s218, 4
        %s220 = scalar_lea.vmem %s1, %s219
        %s221 = smul.u32 128, %s17
        %p223 = scmp.eq.s32.totalorder %s17, 0
        // Predicated region
        $region41: #{head.1} parent=35 // pred_check
          %p224 = pneg %p223
        $region42: #{head.1} parent=35 // pred_check_branch
          %226 = sbr.rel (%p224) target = $region44
        $region43: #{head.1} parent=35 // pred_region
          %v227 = vld [vmem:[%s3] sm:$0x1]
          %v229 = vlaneseq
          %v230 = vshrl.u32 %v229, 7
          %v231 = vsub.s32 0, %v230
          %v232 = vrot.slane %v227, %v231
          %vm234 = vcmask 345088
          %235 = vst.msk [vmem:[#allocation5] sm:$0x3] %vm234, %v232
        $region44: #{head.1} parent=35 // pred_fallthru
          _
        %v236 = vld [vmem:[%s214] sm:$0xff]
        %v237 = vld [vmem:[%s214 + $0x8] sm:$0xff]
        %v240 = vcombine.high %v236, %v236
        %v242 = vunpack.c.l.s4 1983009808
        %v243 = vunpack.c.0.s8 %v242
        %v244 = vlaneseq
        %v245 = vshrl.u32 %v244, 7
        %v246 = vsub.s32 %v243, %v245
        %v247 = vrot.slane %v236, %v246
        %v249 = vunpack.c.l.s4 1983009808
        %v250 = vunpack.c.0.s8 %v249
        %v251 = vlaneseq
        %v252 = vshrl.u32 %v251, 7
        %v253 = vsub.s32 %v250, %v252
        %v254 = vrot.slane %v240, %v253
        %v255 = vcombine.high %v247, %v247
        %v256 = vcombine.high %v254, %v254
        %v257 = vcombine.high %v237, %v237
        %v259 = vunpack.c.l.s4 1983009808
        %v260 = vunpack.c.0.s8 %v259
        %v261 = vlaneseq
        %v262 = vshrl.u32 %v261, 7
        %v263 = vsub.s32 %v260, %v262
        %v264 = vrot.slane %v237, %v263
        %v266 = vunpack.c.l.s4 1983009808
        %v267 = vunpack.c.0.s8 %v266
        %v268 = vlaneseq
        %v269 = vshrl.u32 %v268, 7
        %v270 = vsub.s32 %v267, %v269
        %v271 = vrot.slane %v257, %v270
        %v272 = vcombine.high %v264, %v264
        %v273 = vcombine.high %v271, %v271
        %vm282 = vcmask 1041408
        %v283 = vsel %vm282, %v247, 0.0
        %v284 = vrot.slane %v283, 4
        %v285 = vadd.f32 %v283, %v284
        %v286 = vrot.slane %v285, 2
        %v287 = vadd.f32 %v285, %v286
        %v288 = vrot.slane %v287, 1
        %v289 = vadd.f32 %v287, %v288
        %v290 = vsel %vm282, %v255, 0.0
        %v291 = vrot.slane %v290, 4
        %v292 = vadd.f32 %v290, %v291
        %v293 = vrot.slane %v292, 2
        %v294 = vadd.f32 %v292, %v293
        %v295 = vrot.slane %v294, 1
        %v296 = vadd.f32 %v294, %v295
        %v297 = vsel %vm282, %v254, 0.0
        %v298 = vrot.slane %v297, 4
        %v299 = vadd.f32 %v297, %v298
        %v300 = vrot.slane %v299, 2
        %v301 = vadd.f32 %v299, %v300
        %v302 = vrot.slane %v301, 1
        %v303 = vadd.f32 %v301, %v302
        %v304 = vsel %vm282, %v256, 0.0
        %v305 = vrot.slane %v304, 4
        %v306 = vadd.f32 %v304, %v305
        %v307 = vrot.slane %v306, 2
        %v308 = vadd.f32 %v306, %v307
        %v309 = vrot.slane %v308, 1
        %v310 = vadd.f32 %v308, %v309
        %v311 = vsel %vm282, %v264, 0.0
        %v312 = vrot.slane %v311, 4
        %v313 = vadd.f32 %v311, %v312
        %v314 = vrot.slane %v313, 2
        %v315 = vadd.f32 %v313, %v314
        %v316 = vrot.slane %v315, 1
        %v317 = vadd.f32 %v315, %v316
        %v318 = vsel %vm282, %v272, 0.0
        %v319 = vrot.slane %v318, 4
        %v320 = vadd.f32 %v318, %v319
        %v321 = vrot.slane %v320, 2
        %v322 = vadd.f32 %v320, %v321
        %v323 = vrot.slane %v322, 1
        %v324 = vadd.f32 %v322, %v323
        %v325 = vsel %vm282, %v271, 0.0
        %v326 = vrot.slane %v325, 4
        %v327 = vadd.f32 %v325, %v326
        %v328 = vrot.slane %v327, 2
        %v329 = vadd.f32 %v327, %v328
        %v330 = vrot.slane %v329, 1
        %v331 = vadd.f32 %v329, %v330
        %v332 = vsel %vm282, %v273, 0.0
        %v333 = vrot.slane %v332, 4
        %v334 = vadd.f32 %v332, %v333
        %v335 = vrot.slane %v334, 2
        %v336 = vadd.f32 %v334, %v335
        %v337 = vrot.slane %v336, 1
        %v338 = vadd.f32 %v336, %v337
        %v339 = vmul.f32 %v236, %v236
        %v340 = vmul.f32 %v237, %v237
        %v343 = vcombine.high %v339, %v339
        %v345 = vunpack.c.l.s4 1983009808
        %v346 = vunpack.c.0.s8 %v345
        %v347 = vlaneseq
        %v348 = vshrl.u32 %v347, 7
        %v349 = vsub.s32 %v346, %v348
        %v350 = vrot.slane %v339, %v349
        %v352 = vunpack.c.l.s4 1983009808
        %v353 = vunpack.c.0.s8 %v352
        %v354 = vlaneseq
        %v355 = vshrl.u32 %v354, 7
        %v356 = vsub.s32 %v353, %v355
        %v357 = vrot.slane %v343, %v356
        %v358 = vcombine.high %v350, %v350
        %v359 = vcombine.high %v357, %v357
        %v360 = vcombine.high %v340, %v340
        %v362 = vunpack.c.l.s4 1983009808
        %v363 = vunpack.c.0.s8 %v362
        %v364 = vlaneseq
        %v365 = vshrl.u32 %v364, 7
        %v366 = vsub.s32 %v363, %v365
        %v367 = vrot.slane %v340, %v366
        %v369 = vunpack.c.l.s4 1983009808
        %v370 = vunpack.c.0.s8 %v369
        %v371 = vlaneseq
        %v372 = vshrl.u32 %v371, 7
        %v373 = vsub.s32 %v370, %v372
        %v374 = vrot.slane %v360, %v373
        %v375 = vcombine.high %v367, %v367
        %v376 = vcombine.high %v374, %v374
        %v385 = vsel %vm282, %v350, 0.0
        %v386 = vrot.slane %v385, 4
        %v387 = vadd.f32 %v385, %v386
        %v388 = vrot.slane %v387, 2
        %v389 = vadd.f32 %v387, %v388
        %v390 = vrot.slane %v389, 1
        %v391 = vadd.f32 %v389, %v390
        %v392 = vsel %vm282, %v358, 0.0
        %v393 = vrot.slane %v392, 4
        %v394 = vadd.f32 %v392, %v393
        %v395 = vrot.slane %v394, 2
        %v396 = vadd.f32 %v394, %v395
        %v397 = vrot.slane %v396, 1
        %v398 = vadd.f32 %v396, %v397
        %v399 = vsel %vm282, %v357, 0.0
        %v400 = vrot.slane %v399, 4
        %v401 = vadd.f32 %v399, %v400
        %v402 = vrot.slane %v401, 2
        %v403 = vadd.f32 %v401, %v402
        %v404 = vrot.slane %v403, 1
        %v405 = vadd.f32 %v403, %v404
        %v406 = vsel %vm282, %v359, 0.0
        %v407 = vrot.slane %v406, 4
        %v408 = vadd.f32 %v406, %v407
        %v409 = vrot.slane %v408, 2
        %v410 = vadd.f32 %v408, %v409
        %v411 = vrot.slane %v410, 1
        %v412 = vadd.f32 %v410, %v411
        %v413 = vsel %vm282, %v367, 0.0
        %v414 = vrot.slane %v413, 4
        %v415 = vadd.f32 %v413, %v414
        %v416 = vrot.slane %v415, 2
        %v417 = vadd.f32 %v415, %v416
        %v418 = vrot.slane %v417, 1
        %v419 = vadd.f32 %v417, %v418
        %v420 = vsel %vm282, %v375, 0.0
        %v421 = vrot.slane %v420, 4
        %v422 = vadd.f32 %v420, %v421
        %v423 = vrot.slane %v422, 2
        %v424 = vadd.f32 %v422, %v423
        %v425 = vrot.slane %v424, 1
        %v426 = vadd.f32 %v424, %v425
        %v427 = vsel %vm282, %v374, 0.0
        %v428 = vrot.slane %v427, 4
        %v429 = vadd.f32 %v427, %v428
        %v430 = vrot.slane %v429, 2
        %v431 = vadd.f32 %v429, %v430
        %v432 = vrot.slane %v431, 1
        %v433 = vadd.f32 %v431, %v432
        %v434 = vsel %vm282, %v376, 0.0
        %v435 = vrot.slane %v434, 4
        %v436 = vadd.f32 %v434, %v435
        %v437 = vrot.slane %v436, 2
        %v438 = vadd.f32 %v436, %v437
        %v439 = vrot.slane %v438, 1
        %v440 = vadd.f32 %v438, %v439
        %s441 = smul.u32 %s17, 4
        %v442 = vadd.f32 %v289, %v296
        %443 = vadd.xlane.f32.xlu0 %v442
        %v444 = vpop.xlane.xlu0 %443
        %v445 = vadd.f32 %v391, %v398
        %446 = vadd.xlane.f32.xlu0 %v445
        %v447 = vpop.xlane.xlu0 %446
        %v448 = vmul.f32 %v444, 0.001953125
        %v449 = vmul.f32 %v447, 0.001953125
        %v450 = vmul.f32 %v448, %v448
        %v451 = vsub.f32 %v449, %v450
        %v452 = vadd.f32 %v451, 1e-05
        %v453 = vrsqrt.pop %v452
        %s454 = sld [smem:[#allocation2 + %s441]]
        %s455 = sshra.s32 %s441, 7
        %s456 = sand.u32 %s441, 127
        %s457 = sadd.s32 %s455, 1
        %s458 = smul.u32 %s457, 128
        %s459 = sshra.s32 %s441, 7
        %s460 = sand.u32 %s441, 127
        %s461 = sadd.s32 %s458, %s460
        %s462 = sld [smem:[#allocation2 + %s461]]
        %v463 = vstv %s454
        %v464 = vmul.f32 %v453, %v463
        %v465 = vmul.f32 %v448, %v464
        %v466 = vstv %s462
        %v467 = vsub.f32 %v466, %v465
        %v468 = vadd.f32 %v303, %v310
        %469 = vadd.xlane.f32.xlu0 %v468
        %v470 = vpop.xlane.xlu0 %469
        %v471 = vadd.f32 %v405, %v412
        %472 = vadd.xlane.f32.xlu0 %v471
        %v473 = vpop.xlane.xlu0 %472
        %v474 = vmul.f32 %v470, 0.001953125
        %v475 = vmul.f32 %v473, 0.001953125
        %v476 = vmul.f32 %v474, %v474
        %v477 = vsub.f32 %v475, %v476
        %v478 = vadd.f32 %v477, 1e-05
        %v479 = vrsqrt.pop %v478
        %s480 = sadd.s32 %s441, 1
        %s481 = sld [smem:[#allocation2 + %s480]]
        %s482 = sshra.s32 %s480, 7
        %s483 = sand.u32 %s480, 127
        %s484 = sadd.s32 %s482, 1
        %s485 = smul.u32 %s484, 128
        %s486 = sshra.s32 %s480, 7
        %s487 = sand.u32 %s480, 127
        %s488 = sadd.s32 %s485, %s487
        %s489 = sld [smem:[#allocation2 + %s488]]
        %v490 = vstv %s481
        %v491 = vmul.f32 %v479, %v490
        %v492 = vmul.f32 %v474, %v491
        %v493 = vstv %s489
        %v494 = vsub.f32 %v493, %v492
        %v495 = vadd.f32 %v317, %v324
        %496 = vadd.xlane.f32.xlu0 %v495
        %v497 = vpop.xlane.xlu0 %496
        %v498 = vadd.f32 %v419, %v426
        %499 = vadd.xlane.f32.xlu0 %v498
        %v500 = vpop.xlane.xlu0 %499
        %v501 = vmul.f32 %v497, 0.001953125
        %v502 = vmul.f32 %v500, 0.001953125
        %v503 = vmul.f32 %v501, %v501
        %v504 = vsub.f32 %v502, %v503
        %v505 = vadd.f32 %v504, 1e-05
        %v506 = vrsqrt.pop %v505
        %s507 = sadd.s32 %s441, 2
        %s508 = sld [smem:[#allocation2 + %s507]]
        %s509 = sshra.s32 %s507, 7
        %s510 = sand.u32 %s507, 127
        %s511 = sadd.s32 %s509, 1
        %s512 = smul.u32 %s511, 128
        %s513 = sshra.s32 %s507, 7
        %s514 = sand.u32 %s507, 127
        %s515 = sadd.s32 %s512, %s514
        %s516 = sld [smem:[#allocation2 + %s515]]
        %v517 = vstv %s508
        %v518 = vmul.f32 %v506, %v517
        %v519 = vmul.f32 %v501, %v518
        %v520 = vstv %s516
        %v521 = vsub.f32 %v520, %v519
        %v522 = vadd.f32 %v331, %v338
        %523 = vadd.xlane.f32.xlu0 %v522
        %v524 = vpop.xlane.xlu0 %523
        %v525 = vadd.f32 %v433, %v440
        %526 = vadd.xlane.f32.xlu0 %v525
        %v527 = vpop.xlane.xlu0 %526
        %v528 = vmul.f32 %v524, 0.001953125
        %v529 = vmul.f32 %v527, 0.001953125
        %v530 = vmul.f32 %v528, %v528
        %v531 = vsub.f32 %v529, %v530
        %v532 = vadd.f32 %v531, 1e-05
        %v533 = vrsqrt.pop %v532
        %s534 = sadd.s32 %s441, 3
        %s535 = sld [smem:[#allocation2 + %s534]]
        %s536 = sshra.s32 %s534, 7
        %s537 = sand.u32 %s534, 127
        %s538 = sadd.s32 %s536, 1
        %s539 = smul.u32 %s538, 128
        %s540 = sshra.s32 %s534, 7
        %s541 = sand.u32 %s534, 127
        %s542 = sadd.s32 %s539, %s541
        %s543 = sld [smem:[#allocation2 + %s542]]
        %v544 = vstv %s535
        %v545 = vmul.f32 %v533, %v544
        %v546 = vmul.f32 %v528, %v545
        %v547 = vstv %s543
        %v548 = vsub.f32 %v547, %v546
        %v549 = vlaneseq
        %v550 = vshrl.u32 %v549, 7
        %v551 = vsub.s32 0, %v550
        %v552 = vrot.slane %v464, %v551
        %v553 = vlaneseq
        %v554 = vshrl.u32 %v553, 7
        %v555 = vsub.s32 0, %v554
        %v556 = vrot.slane %v491, %v555
        %v557 = vlaneseq
        %v558 = vshrl.u32 %v557, 7
        %v559 = vsub.s32 0, %v558
        %v560 = vrot.slane %v518, %v559
        %v561 = vlaneseq
        %v562 = vshrl.u32 %v561, 7
        %v563 = vsub.s32 0, %v562
        %v564 = vrot.slane %v545, %v563
        %v569 = vcombine.low %v552, %v552
        %v570 = vcombine.low %v556, %v556
        %v572 = vunpack.c.l.s4 1983009808
        %v573 = vunpack.c.0.s8 %v572
        %v574 = vlaneseq
        %v575 = vshrl.u32 %v574, 7
        %v576 = vsub.s32 %v573, %v575
        %v577 = vrot.slane %v569, %v576
        %v579 = vunpack.c.l.s4 1983009808
        %v580 = vunpack.c.0.s8 %v579
        %v581 = vlaneseq
        %v582 = vshrl.u32 %v581, 7
        %v583 = vsub.s32 %v580, %v582
        %v584 = vrot.slane %v570, %v583
        %v585 = vcombine.low %v577, %v584
        %v586 = vcombine.low %v560, %v560
        %v587 = vcombine.low %v564, %v564
        %v589 = vunpack.c.l.s4 1983009808
        %v590 = vunpack.c.0.s8 %v589
        %v591 = vlaneseq
        %v592 = vshrl.u32 %v591, 7
        %v593 = vsub.s32 %v590, %v592
        %v594 = vrot.slane %v586, %v593
        %v596 = vunpack.c.l.s4 1983009808
        %v597 = vunpack.c.0.s8 %v596
        %v598 = vlaneseq
        %v599 = vshrl.u32 %v598, 7
        %v600 = vsub.s32 %v597, %v599
        %v601 = vrot.slane %v587, %v600
        %v602 = vcombine.low %v594, %v601
        %v605 = vmul.f32 %v236, %v585
        %v606 = vmul.f32 %v237, %v602
        %v607 = vlaneseq
        %v608 = vshrl.u32 %v607, 7
        %v609 = vsub.s32 0, %v608
        %v610 = vrot.slane %v467, %v609
        %v611 = vlaneseq
        %v612 = vshrl.u32 %v611, 7
        %v613 = vsub.s32 0, %v612
        %v614 = vrot.slane %v494, %v613
        %v615 = vlaneseq
        %v616 = vshrl.u32 %v615, 7
        %v617 = vsub.s32 0, %v616
        %v618 = vrot.slane %v521, %v617
        %v619 = vlaneseq
        %v620 = vshrl.u32 %v619, 7
        %v621 = vsub.s32 0, %v620
        %v622 = vrot.slane %v548, %v621
        %v627 = vcombine.low %v610, %v610
        %v628 = vcombine.low %v614, %v614
        %v630 = vunpack.c.l.s4 1983009808
        %v631 = vunpack.c.0.s8 %v630
        %v632 = vlaneseq
        %v633 = vshrl.u32 %v632, 7
        %v634 = vsub.s32 %v631, %v633
        %v635 = vrot.slane %v627, %v634
        %v637 = vunpack.c.l.s4 1983009808
        %v638 = vunpack.c.0.s8 %v637
        %v639 = vlaneseq
        %v640 = vshrl.u32 %v639, 7
        %v641 = vsub.s32 %v638, %v640
        %v642 = vrot.slane %v628, %v641
        %v643 = vcombine.low %v635, %v642
        %v644 = vcombine.low %v618, %v618
        %v645 = vcombine.low %v622, %v622
        %v647 = vunpack.c.l.s4 1983009808
        %v648 = vunpack.c.0.s8 %v647
        %v649 = vlaneseq
        %v650 = vshrl.u32 %v649, 7
        %v651 = vsub.s32 %v648, %v650
        %v652 = vrot.slane %v644, %v651
        %v654 = vunpack.c.l.s4 1983009808
        %v655 = vunpack.c.0.s8 %v654
        %v656 = vlaneseq
        %v657 = vshrl.u32 %v656, 7
        %v658 = vsub.s32 %v655, %v657
        %v659 = vrot.slane %v645, %v658
        %v660 = vcombine.low %v652, %v659
        %v663 = vadd.f32 %v605, %v643
        %v664 = vadd.f32 %v606, %v660
        %v665 = vmax.f32 %v663, 0.0
        %v666 = vmax.f32 %v664, 0.0
        %v669 = vcombine.high %v665, %v665
        %v671 = vunpack.c.l.s4 1983009808
        %v672 = vunpack.c.0.s8 %v671
        %v673 = vlaneseq
        %v674 = vshrl.u32 %v673, 7
        %v675 = vsub.s32 %v672, %v674
        %v676 = vrot.slane %v665, %v675
        %v678 = vunpack.c.l.s4 1983009808
        %v679 = vunpack.c.0.s8 %v678
        %v680 = vlaneseq
        %v681 = vshrl.u32 %v680, 7
        %v682 = vsub.s32 %v679, %v681
        %v683 = vrot.slane %v669, %v682
        %v684 = vcombine.high %v676, %v676
        %v685 = vcombine.high %v683, %v683
        %v686 = vcombine.high %v666, %v666
        %v688 = vunpack.c.l.s4 1983009808
        %v689 = vunpack.c.0.s8 %v688
        %v690 = vlaneseq
        %v691 = vshrl.u32 %v690, 7
        %v692 = vsub.s32 %v689, %v691
        %v693 = vrot.slane %v666, %v692
        %v695 = vunpack.c.l.s4 1983009808
        %v696 = vunpack.c.0.s8 %v695
        %v697 = vlaneseq
        %v698 = vshrl.u32 %v697, 7
        %v699 = vsub.s32 %v696, %v698
        %v700 = vrot.slane %v686, %v699
        %v701 = vcombine.high %v693, %v693
        %v702 = vcombine.high %v700, %v700
        %v711 = vpack.c.bf16 %v676, %v676
        %v712 = vpack.c.bf16 %v684, %v684
        %v713 = vpack.c.bf16 %v683, %v683
        %v714 = vpack.c.bf16 %v685, %v685
        %v715 = vpack.c.bf16 %v693, %v693
        %v716 = vpack.c.bf16 %v701, %v701
        %v717 = vpack.c.bf16 %v700, %v700
        %v718 = vpack.c.bf16 %v702, %v702
        %v719 = vld [vmem:[%s220] sm:$0xf]
        %v720 = vld [vmem:[%s220 + $0x4] sm:$0xf]
        %v721 = vld [vmem:[%s220 + $0x8] sm:$0xf]
        %v722 = vld [vmem:[%s220 + $0xc] sm:$0xf]
        %v723 = vld [vmem:[%s220 + $0x10] sm:$0xf]
        %v724 = vld [vmem:[%s220 + $0x14] sm:$0xf]
        %v725 = vld [vmem:[%s220 + $0x18] sm:$0xf]
        %v726 = vld [vmem:[%s220 + $0x1c] sm:$0xf]
        %v727 = vld [vmem:[%s220 + $0x20] sm:$0xf]
        %v728 = vld [vmem:[%s220 + $0x24] sm:$0xf]
        %v729 = vld [vmem:[%s220 + $0x28] sm:$0xf]
        %v730 = vld [vmem:[%s220 + $0x2c] sm:$0xf]
        %v731 = vld [vmem:[%s220 + $0x30] sm:$0xf]
        %v732 = vld [vmem:[%s220 + $0x34] sm:$0xf]
        %v733 = vld [vmem:[%s220 + $0x38] sm:$0xf]
        %v734 = vld [vmem:[%s220 + $0x3c] sm:$0xf]
        %v735 = vld [vmem:[%s220 + $0x40] sm:$0xf]
        %v736 = vld [vmem:[%s220 + $0x44] sm:$0xf]
        %v737 = vld [vmem:[%s220 + $0x48] sm:$0xf]
        %v738 = vld [vmem:[%s220 + $0x4c] sm:$0xf]
        %v739 = vld [vmem:[%s220 + $0x50] sm:$0xf]
        %v740 = vld [vmem:[%s220 + $0x54] sm:$0xf]
        %v741 = vld [vmem:[%s220 + $0x58] sm:$0xf]
        %v742 = vld [vmem:[%s220 + $0x5c] sm:$0xf]
        %v743 = vld [vmem:[%s220 + $0x60] sm:$0xf]
        %v744 = vld [vmem:[%s220 + $0x64] sm:$0xf]
        %v745 = vld [vmem:[%s220 + $0x68] sm:$0xf]
        %v746 = vld [vmem:[%s220 + $0x6c] sm:$0xf]
        %v747 = vld [vmem:[%s220 + $0x70] sm:$0xf]
        %v748 = vld [vmem:[%s220 + $0x74] sm:$0xf]
        %v749 = vld [vmem:[%s220 + $0x78] sm:$0xf]
        %v750 = vld [vmem:[%s220 + $0x7c] sm:$0xf]
        %v751 = vld [vmem:[%s220 + $0x80] sm:$0xf]
        %v752 = vld [vmem:[%s220 + $0x84] sm:$0xf]
        %v753 = vld [vmem:[%s220 + $0x88] sm:$0xf]
        %v754 = vld [vmem:[%s220 + $0x8c] sm:$0xf]
        %v755 = vld [vmem:[%s220 + $0x90] sm:$0xf]
        %v756 = vld [vmem:[%s220 + $0x94] sm:$0xf]
        %v757 = vld [vmem:[%s220 + $0x98] sm:$0xf]
        %v758 = vld [vmem:[%s220 + $0x9c] sm:$0xf]
        %v759 = vld [vmem:[%s220 + $0xa0] sm:$0xf]
        %v760 = vld [vmem:[%s220 + $0xa4] sm:$0xf]
        %v761 = vld [vmem:[%s220 + $0xa8] sm:$0xf]
        %v762 = vld [vmem:[%s220 + $0xac] sm:$0xf]
        %v763 = vld [vmem:[%s220 + $0xb0] sm:$0xf]
        %v764 = vld [vmem:[%s220 + $0xb4] sm:$0xf]
        %v765 = vld [vmem:[%s220 + $0xb8] sm:$0xf]
        %v766 = vld [vmem:[%s220 + $0xbc] sm:$0xf]
        %v767 = vld [vmem:[%s220 + $0xc0] sm:$0xf]
        %v768 = vld [vmem:[%s220 + $0xc4] sm:$0xf]
        %v769 = vld [vmem:[%s220 + $0xc8] sm:$0xf]
        %v770 = vld [vmem:[%s220 + $0xcc] sm:$0xf]
        %v771 = vld [vmem:[%s220 + $0xd0] sm:$0xf]
        %v772 = vld [vmem:[%s220 + $0xd4] sm:$0xf]
        %v773 = vld [vmem:[%s220 + $0xd8] sm:$0xf]
        %v774 = vld [vmem:[%s220 + $0xdc] sm:$0xf]
        %v775 = vld [vmem:[%s220 + $0xe0] sm:$0xf]
        %v776 = vld [vmem:[%s220 + $0xe4] sm:$0xf]
        %v777 = vld [vmem:[%s220 + $0xe8] sm:$0xf]
        %v778 = vld [vmem:[%s220 + $0xec] sm:$0xf]
        %v779 = vld [vmem:[%s220 + $0xf0] sm:$0xf]
        %v780 = vld [vmem:[%s220 + $0xf4] sm:$0xf]
        %v781 = vld [vmem:[%s220 + $0xf8] sm:$0xf]
        %v782 = vld [vmem:[%s220 + $0xfc] sm:$0xf]
        %v783 = vld [vmem:[%s220 + $0x100] sm:$0xf]
        %v784 = vld [vmem:[%s220 + $0x104] sm:$0xf]
        %v785 = vld [vmem:[%s220 + $0x108] sm:$0xf]
        %v786 = vld [vmem:[%s220 + $0x10c] sm:$0xf]
        %v787 = vld [vmem:[%s220 + $0x110] sm:$0xf]
        %v788 = vld [vmem:[%s220 + $0x114] sm:$0xf]
        %v789 = vld [vmem:[%s220 + $0x118] sm:$0xf]
        %v790 = vld [vmem:[%s220 + $0x11c] sm:$0xf]
        %v791 = vld [vmem:[%s220 + $0x120] sm:$0xf]
        %v792 = vld [vmem:[%s220 + $0x124] sm:$0xf]
        %v793 = vld [vmem:[%s220 + $0x128] sm:$0xf]
        %v794 = vld [vmem:[%s220 + $0x12c] sm:$0xf]
        %v795 = vld [vmem:[%s220 + $0x130] sm:$0xf]
        %v796 = vld [vmem:[%s220 + $0x134] sm:$0xf]
        %v797 = vld [vmem:[%s220 + $0x138] sm:$0xf]
        %v798 = vld [vmem:[%s220 + $0x13c] sm:$0xf]
        %v799 = vld [vmem:[%s220 + $0x140] sm:$0xf]
        %v800 = vld [vmem:[%s220 + $0x144] sm:$0xf]
        %v801 = vld [vmem:[%s220 + $0x148] sm:$0xf]
        %v802 = vld [vmem:[%s220 + $0x14c] sm:$0xf]
        %v803 = vld [vmem:[%s220 + $0x150] sm:$0xf]
        %v804 = vld [vmem:[%s220 + $0x154] sm:$0xf]
        %v805 = vld [vmem:[%s220 + $0x158] sm:$0xf]
        %v806 = vld [vmem:[%s220 + $0x15c] sm:$0xf]
        %v807 = vld [vmem:[%s220 + $0x160] sm:$0xf]
        %v808 = vld [vmem:[%s220 + $0x164] sm:$0xf]
        %v809 = vld [vmem:[%s220 + $0x168] sm:$0xf]
        %v810 = vld [vmem:[%s220 + $0x16c] sm:$0xf]
        %v811 = vld [vmem:[%s220 + $0x170] sm:$0xf]
        %v812 = vld [vmem:[%s220 + $0x174] sm:$0xf]
        %v813 = vld [vmem:[%s220 + $0x178] sm:$0xf]
        %v814 = vld [vmem:[%s220 + $0x17c] sm:$0xf]
        %v815 = vld [vmem:[%s220 + $0x180] sm:$0xf]
        %v816 = vld [vmem:[%s220 + $0x184] sm:$0xf]
        %v817 = vld [vmem:[%s220 + $0x188] sm:$0xf]
        %v818 = vld [vmem:[%s220 + $0x18c] sm:$0xf]
        %v819 = vld [vmem:[%s220 + $0x190] sm:$0xf]
        %v820 = vld [vmem:[%s220 + $0x194] sm:$0xf]
        %v821 = vld [vmem:[%s220 + $0x198] sm:$0xf]
        %v822 = vld [vmem:[%s220 + $0x19c] sm:$0xf]
        %v823 = vld [vmem:[%s220 + $0x1a0] sm:$0xf]
        %v824 = vld [vmem:[%s220 + $0x1a4] sm:$0xf]
        %v825 = vld [vmem:[%s220 + $0x1a8] sm:$0xf]
        %v826 = vld [vmem:[%s220 + $0x1ac] sm:$0xf]
        %v827 = vld [vmem:[%s220 + $0x1b0] sm:$0xf]
        %v828 = vld [vmem:[%s220 + $0x1b4] sm:$0xf]
        %v829 = vld [vmem:[%s220 + $0x1b8] sm:$0xf]
        %v830 = vld [vmem:[%s220 + $0x1bc] sm:$0xf]
        %v831 = vld [vmem:[%s220 + $0x1c0] sm:$0xf]
        %v832 = vld [vmem:[%s220 + $0x1c4] sm:$0xf]
        %v833 = vld [vmem:[%s220 + $0x1c8] sm:$0xf]
        %v834 = vld [vmem:[%s220 + $0x1cc] sm:$0xf]
        %v835 = vld [vmem:[%s220 + $0x1d0] sm:$0xf]
        %v836 = vld [vmem:[%s220 + $0x1d4] sm:$0xf]
        %v837 = vld [vmem:[%s220 + $0x1d8] sm:$0xf]
        %v838 = vld [vmem:[%s220 + $0x1dc] sm:$0xf]
        %v839 = vld [vmem:[%s220 + $0x1e0] sm:$0xf]
        %v840 = vld [vmem:[%s220 + $0x1e4] sm:$0xf]
        %v841 = vld [vmem:[%s220 + $0x1e8] sm:$0xf]
        %v842 = vld [vmem:[%s220 + $0x1ec] sm:$0xf]
        %v843 = vld [vmem:[%s220 + $0x1f0] sm:$0xf]
        %v844 = vld [vmem:[%s220 + $0x1f4] sm:$0xf]
        %v845 = vld [vmem:[%s220 + $0x1f8] sm:$0xf]
        %v846 = vld [vmem:[%s220 + $0x1fc] sm:$0xf]
        %v975 = vunpack.c.l.b16 %v719
        %v976 = vunpack.c.l.b16 %v720
        %v977 = vunpack.c.l.b16 %v721
        %v978 = vunpack.c.l.b16 %v722
        %v979 = vunpack.c.l.b16 %v723
        %v980 = vunpack.c.l.b16 %v724
        %v981 = vunpack.c.l.b16 %v725
        %v982 = vunpack.c.l.b16 %v726
        %v983 = vunpack.c.l.b16 %v727
        %v984 = vunpack.c.l.b16 %v728
        %v985 = vunpack.c.l.b16 %v729
        %v986 = vunpack.c.l.b16 %v730
        %v987 = vunpack.c.l.b16 %v731
        %v988 = vunpack.c.l.b16 %v732
        %v989 = vunpack.c.l.b16 %v733
        %v990 = vunpack.c.l.b16 %v734
        %v991 = vunpack.c.l.b16 %v735
        %v992 = vunpack.c.l.b16 %v736
        %v993 = vunpack.c.l.b16 %v737
        %v994 = vunpack.c.l.b16 %v738
        %v995 = vunpack.c.l.b16 %v739
        %v996 = vunpack.c.l.b16 %v740
        %v997 = vunpack.c.l.b16 %v741
        %v998 = vunpack.c.l.b16 %v742
        %v999 = vunpack.c.l.b16 %v743
        %v1000 = vunpack.c.l.b16 %v744
        %v1001 = vunpack.c.l.b16 %v745
        %v1002 = vunpack.c.l.b16 %v746
        %v1003 = vunpack.c.l.b16 %v747
        %v1004 = vunpack.c.l.b16 %v748
        %v1005 = vunpack.c.l.b16 %v749
        %v1006 = vunpack.c.l.b16 %v750
        %v1007 = vunpack.c.l.b16 %v751
        %v1008 = vunpack.c.l.b16 %v752
        %v1009 = vunpack.c.l.b16 %v753
        %v1010 = vunpack.c.l.b16 %v754
        %v1011 = vunpack.c.l.b16 %v755
        %v1012 = vunpack.c.l.b16 %v756
        %v1013 = vunpack.c.l.b16 %v757
        %v1014 = vunpack.c.l.b16 %v758
        %v1015 = vunpack.c.l.b16 %v759
        %v1016 = vunpack.c.l.b16 %v760
        %v1017 = vunpack.c.l.b16 %v761
        %v1018 = vunpack.c.l.b16 %v762
        %v1019 = vunpack.c.l.b16 %v763
        %v1020 = vunpack.c.l.b16 %v764
        %v1021 = vunpack.c.l.b16 %v765
        %v1022 = vunpack.c.l.b16 %v766
        %v1023 = vunpack.c.l.b16 %v767
        %v1024 = vunpack.c.l.b16 %v768
        %v1025 = vunpack.c.l.b16 %v769
        %v1026 = vunpack.c.l.b16 %v770
        %v1027 = vunpack.c.l.b16 %v771
        %v1028 = vunpack.c.l.b16 %v772
        %v1029 = vunpack.c.l.b16 %v773
        %v1030 = vunpack.c.l.b16 %v774
        %v1031 = vunpack.c.l.b16 %v775
        %v1032 = vunpack.c.l.b16 %v776
        %v1033 = vunpack.c.l.b16 %v777
        %v1034 = vunpack.c.l.b16 %v778
        %v1035 = vunpack.c.l.b16 %v779
        %v1036 = vunpack.c.l.b16 %v780
        %v1037 = vunpack.c.l.b16 %v781
        %v1038 = vunpack.c.l.b16 %v782
        %v1039 = vunpack.c.l.b16 %v783
        %v1040 = vunpack.c.l.b16 %v784
        %v1041 = vunpack.c.l.b16 %v785
        %v1042 = vunpack.c.l.b16 %v786
        %v1043 = vunpack.c.l.b16 %v787
        %v1044 = vunpack.c.l.b16 %v788
        %v1045 = vunpack.c.l.b16 %v789
        %v1046 = vunpack.c.l.b16 %v790
        %v1047 = vunpack.c.l.b16 %v791
        %v1048 = vunpack.c.l.b16 %v792
        %v1049 = vunpack.c.l.b16 %v793
        %v1050 = vunpack.c.l.b16 %v794
        %v1051 = vunpack.c.l.b16 %v795
        %v1052 = vunpack.c.l.b16 %v796
        %v1053 = vunpack.c.l.b16 %v797
        %v1054 = vunpack.c.l.b16 %v798
        %v1055 = vunpack.c.l.b16 %v799
        %v1056 = vunpack.c.l.b16 %v800
        %v1057 = vunpack.c.l.b16 %v801
        %v1058 = vunpack.c.l.b16 %v802
        %v1059 = vunpack.c.l.b16 %v803
        %v1060 = vunpack.c.l.b16 %v804
        %v1061 = vunpack.c.l.b16 %v805
        %v1062 = vunpack.c.l.b16 %v806
        %v1063 = vunpack.c.l.b16 %v807
        %v1064 = vunpack.c.l.b16 %v808
        %v1065 = vunpack.c.l.b16 %v809
        %v1066 = vunpack.c.l.b16 %v810
        %v1067 = vunpack.c.l.b16 %v811
        %v1068 = vunpack.c.l.b16 %v812
        %v1069 = vunpack.c.l.b16 %v813
        %v1070 = vunpack.c.l.b16 %v814
        %v1071 = vunpack.c.l.b16 %v815
        %v1072 = vunpack.c.l.b16 %v816
        %v1073 = vunpack.c.l.b16 %v817
        %v1074 = vunpack.c.l.b16 %v818
        %v1075 = vunpack.c.l.b16 %v819
        %v1076 = vunpack.c.l.b16 %v820
        %v1077 = vunpack.c.l.b16 %v821
        %v1078 = vunpack.c.l.b16 %v822
        %v1079 = vunpack.c.l.b16 %v823
        %v1080 = vunpack.c.l.b16 %v824
        %v1081 = vunpack.c.l.b16 %v825
        %v1082 = vunpack.c.l.b16 %v826
        %v1083 = vunpack.c.l.b16 %v827
        %v1084 = vunpack.c.l.b16 %v828
        %v1085 = vunpack.c.l.b16 %v829
        %v1086 = vunpack.c.l.b16 %v830
        %v1087 = vunpack.c.l.b16 %v831
        %v1088 = vunpack.c.l.b16 %v832
        %v1089 = vunpack.c.l.b16 %v833
        %v1090 = vunpack.c.l.b16 %v834
        %v1091 = vunpack.c.l.b16 %v835
        %v1092 = vunpack.c.l.b16 %v836
        %v1093 = vunpack.c.l.b16 %v837
        %v1094 = vunpack.c.l.b16 %v838
        %v1095 = vunpack.c.l.b16 %v839
        %v1096 = vunpack.c.l.b16 %v840
        %v1097 = vunpack.c.l.b16 %v841
        %v1098 = vunpack.c.l.b16 %v842
        %v1099 = vunpack.c.l.b16 %v843
        %v1100 = vunpack.c.l.b16 %v844
        %v1101 = vunpack.c.l.b16 %v845
        %v1102 = vunpack.c.l.b16 %v846
        %v1103 = vpack.c.b16 %v976, %v975
        %v1104 = vpack.c.b16 %v978, %v977
        %v1105 = vpack.c.b16 %v980, %v979
        %v1106 = vpack.c.b16 %v982, %v981
        %v1107 = vpack.c.b16 %v984, %v983
        %v1108 = vpack.c.b16 %v986, %v985
        %v1109 = vpack.c.b16 %v988, %v987
        %v1110 = vpack.c.b16 %v990, %v989
        %v1111 = vpack.c.b16 %v992, %v991
        %v1112 = vpack.c.b16 %v994, %v993
        %v1113 = vpack.c.b16 %v996, %v995
        %v1114 = vpack.c.b16 %v998, %v997
        %v1115 = vpack.c.b16 %v1000, %v999
        %v1116 = vpack.c.b16 %v1002, %v1001
        %v1117 = vpack.c.b16 %v1004, %v1003
        %v1118 = vpack.c.b16 %v1006, %v1005
        %v1119 = vpack.c.b16 %v1008, %v1007
        %v1120 = vpack.c.b16 %v1010, %v1009
        %v1121 = vpack.c.b16 %v1012, %v1011
        %v1122 = vpack.c.b16 %v1014, %v1013
        %v1123 = vpack.c.b16 %v1016, %v1015
        %v1124 = vpack.c.b16 %v1018, %v1017
        %v1125 = vpack.c.b16 %v1020, %v1019
        %v1126 = vpack.c.b16 %v1022, %v1021
        %v1127 = vpack.c.b16 %v1024, %v1023
        %v1128 = vpack.c.b16 %v1026, %v1025
        %v1129 = vpack.c.b16 %v1028, %v1027
        %v1130 = vpack.c.b16 %v1030, %v1029
        %v1131 = vpack.c.b16 %v1032, %v1031
        %v1132 = vpack.c.b16 %v1034, %v1033
        %v1133 = vpack.c.b16 %v1036, %v1035
        %v1134 = vpack.c.b16 %v1038, %v1037
        %v1135 = vpack.c.b16 %v1040, %v1039
        %v1136 = vpack.c.b16 %v1042, %v1041
        %v1137 = vpack.c.b16 %v1044, %v1043
        %v1138 = vpack.c.b16 %v1046, %v1045
        %v1139 = vpack.c.b16 %v1048, %v1047
        %v1140 = vpack.c.b16 %v1050, %v1049
        %v1141 = vpack.c.b16 %v1052, %v1051
        %v1142 = vpack.c.b16 %v1054, %v1053
        %v1143 = vpack.c.b16 %v1056, %v1055
        %v1144 = vpack.c.b16 %v1058, %v1057
        %v1145 = vpack.c.b16 %v1060, %v1059
        %v1146 = vpack.c.b16 %v1062, %v1061
        %v1147 = vpack.c.b16 %v1064, %v1063
        %v1148 = vpack.c.b16 %v1066, %v1065
        %v1149 = vpack.c.b16 %v1068, %v1067
        %v1150 = vpack.c.b16 %v1070, %v1069
        %v1151 = vpack.c.b16 %v1072, %v1071
        %v1152 = vpack.c.b16 %v1074, %v1073
        %v1153 = vpack.c.b16 %v1076, %v1075
        %v1154 = vpack.c.b16 %v1078, %v1077
        %v1155 = vpack.c.b16 %v1080, %v1079
        %v1156 = vpack.c.b16 %v1082, %v1081
        %v1157 = vpack.c.b16 %v1084, %v1083
        %v1158 = vpack.c.b16 %v1086, %v1085
        %v1159 = vpack.c.b16 %v1088, %v1087
        %v1160 = vpack.c.b16 %v1090, %v1089
        %v1161 = vpack.c.b16 %v1092, %v1091
        %v1162 = vpack.c.b16 %v1094, %v1093
        %v1163 = vpack.c.b16 %v1096, %v1095
        %v1164 = vpack.c.b16 %v1098, %v1097
        %v1165 = vpack.c.b16 %v1100, %v1099
        %v1166 = vpack.c.b16 %v1102, %v1101
        %1231 = vmatprep.subr.bf16.mxu0 0
        %1232 = vmatpush1.bf16.msra.mxu0 %v1103
        %1233 = vmatprep.subr.bf16.mxu0 0
        %1234 = vmatpush1.bf16.msra.mxu0 %v1104
        %1235 = vmatprep.subr.bf16.mxu0 0
        %1236 = vmatpush1.bf16.msra.mxu0 %v1105
        %1237 = vmatprep.subr.bf16.mxu0 0
        %1238 = vmatpush1.bf16.msra.mxu0 %v1106
        %1239 = vmatprep.subr.bf16.mxu0 0
        %1240 = vmatpush1.bf16.msra.mxu0 %v1107
        %1241 = vmatprep.subr.bf16.mxu0 0
        %1242 = vmatpush1.bf16.msra.mxu0 %v1108
        %1243 = vmatprep.subr.bf16.mxu0 0
        %1244 = vmatpush1.bf16.msra.mxu0 %v1109
        %1245 = vmatprep.subr.bf16.mxu0 0
        %1246 = vmatpush1.bf16.msra.mxu0 %v1110
        %1247 = vmatprep.subr.bf16.mxu0 0
        %1248 = vmatpush1.bf16.msra.mxu0 %v1111
        %1249 = vmatprep.subr.bf16.mxu0 0
        %1250 = vmatpush1.bf16.msra.mxu0 %v1112
        %1251 = vmatprep.subr.bf16.mxu0 0
        %1252 = vmatpush1.bf16.msra.mxu0 %v1113
        %1253 = vmatprep.subr.bf16.mxu0 0
        %1254 = vmatpush1.bf16.msra.mxu0 %v1114
        %1255 = vmatprep.subr.bf16.mxu0 0
        %1256 = vmatpush1.bf16.msra.mxu0 %v1115
        %1257 = vmatprep.subr.bf16.mxu0 0
        %1258 = vmatpush1.bf16.msra.mxu0 %v1116
        %1259 = vmatprep.subr.bf16.mxu0 0
        %1260 = vmatpush1.bf16.msra.mxu0 %v1117
        %1261 = vmatprep.subr.bf16.mxu0 0
        %1262 = vmatpush1.bf16.msra.mxu0 %v1118
        %1263 = vmatprep.mubr.bf16.mxu0 %v712
        %1264 = vmatmul.mubr.bf16.gmra.mrb[0].mxu0 %v711
        %v1265 = vpop.f32.mrb[0].mxu0
        %v1266 = vadd.f32 0.0, %v1265
        %v1267 = vpop.f32.mrb[0].mxu0
        %v1268 = vpop.f32.mrb[0].mxu0
        %v1269 = vpop.f32.mrb[0].mxu0
        %1270 = vdwg.mxu0
        %1271 = vmatprep.subr.bf16.mxu0 0
        %1272 = vmatpush1.bf16.msra.mxu0 %v1119
        %1273 = vmatprep.subr.bf16.mxu0 0
        %1274 = vmatpush1.bf16.msra.mxu0 %v1120
        %1275 = vmatprep.subr.bf16.mxu0 0
        %1276 = vmatpush1.bf16.msra.mxu0 %v1121
        %1277 = vmatprep.subr.bf16.mxu0 0
        %1278 = vmatpush1.bf16.msra.mxu0 %v1122
        %1279 = vmatprep.subr.bf16.mxu0 0
        %1280 = vmatpush1.bf16.msra.mxu0 %v1123
        %1281 = vmatprep.subr.bf16.mxu0 0
        %1282 = vmatpush1.bf16.msra.mxu0 %v1124
        %1283 = vmatprep.subr.bf16.mxu0 0
        %1284 = vmatpush1.bf16.msra.mxu0 %v1125
        %1285 = vmatprep.subr.bf16.mxu0 0
        %1286 = vmatpush1.bf16.msra.mxu0 %v1126
        %1287 = vmatprep.subr.bf16.mxu0 0
        %1288 = vmatpush1.bf16.msra.mxu0 %v1127
        %1289 = vmatprep.subr.bf16.mxu0 0
        %1290 = vmatpush1.bf16.msra.mxu0 %v1128
        %1291 = vmatprep.subr.bf16.mxu0 0
        %1292 = vmatpush1.bf16.msra.mxu0 %v1129
        %1293 = vmatprep.subr.bf16.mxu0 0
        %1294 = vmatpush1.bf16.msra.mxu0 %v1130
        %1295 = vmatprep.subr.bf16.mxu0 0
        %1296 = vmatpush1.bf16.msra.mxu0 %v1131
        %1297 = vmatprep.subr.bf16.mxu0 0
        %1298 = vmatpush1.bf16.msra.mxu0 %v1132
        %1299 = vmatprep.subr.bf16.mxu0 0
        %1300 = vmatpush1.bf16.msra.mxu0 %v1133
        %1301 = vmatprep.subr.bf16.mxu0 0
        %1302 = vmatpush1.bf16.msra.mxu0 %v1134
        %1303 = vmatprep.mubr.bf16.mxu0 %v714
        %1304 = vmatmul.mubr.bf16.gmra.mrb[0].mxu0 %v713
        %v1305 = vpop.f32.mrb[0].mxu0
        %v1306 = vadd.f32 %v1266, %v1305
        %v1307 = vpop.f32.mrb[0].mxu0
        %v1308 = vpop.f32.mrb[0].mxu0
        %v1309 = vpop.f32.mrb[0].mxu0
        %1310 = vdwg.mxu0
        %1311 = vmatprep.subr.bf16.mxu0 0
        %1312 = vmatpush1.bf16.msra.mxu0 %v1135
        %1313 = vmatprep.subr.bf16.mxu0 0
        %1314 = vmatpush1.bf16.msra.mxu0 %v1136
        %1315 = vmatprep.subr.bf16.mxu0 0
        %1316 = vmatpush1.bf16.msra.mxu0 %v1137
        %1317 = vmatprep.subr.bf16.mxu0 0
        %1318 = vmatpush1.bf16.msra.mxu0 %v1138
        %1319 = vmatprep.subr.bf16.mxu0 0
        %1320 = vmatpush1.bf16.msra.mxu0 %v1139
        %1321 = vmatprep.subr.bf16.mxu0 0
        %1322 = vmatpush1.bf16.msra.mxu0 %v1140
        %1323 = vmatprep.subr.bf16.mxu0 0
        %1324 = vmatpush1.bf16.msra.mxu0 %v1141
        %1325 = vmatprep.subr.bf16.mxu0 0
        %1326 = vmatpush1.bf16.msra.mxu0 %v1142
        %1327 = vmatprep.subr.bf16.mxu0 0
        %1328 = vmatpush1.bf16.msra.mxu0 %v1143
        %1329 = vmatprep.subr.bf16.mxu0 0
        %1330 = vmatpush1.bf16.msra.mxu0 %v1144
        %1331 = vmatprep.subr.bf16.mxu0 0
        %1332 = vmatpush1.bf16.msra.mxu0 %v1145
        %1333 = vmatprep.subr.bf16.mxu0 0
        %1334 = vmatpush1.bf16.msra.mxu0 %v1146
        %1335 = vmatprep.subr.bf16.mxu0 0
        %1336 = vmatpush1.bf16.msra.mxu0 %v1147
        %1337 = vmatprep.subr.bf16.mxu0 0
        %1338 = vmatpush1.bf16.msra.mxu0 %v1148
        %1339 = vmatprep.subr.bf16.mxu0 0
        %1340 = vmatpush1.bf16.msra.mxu0 %v1149
        %1341 = vmatprep.subr.bf16.mxu0 0
        %1342 = vmatpush1.bf16.msra.mxu0 %v1150
        %1343 = vmatprep.mubr.bf16.mxu0 %v716
        %1344 = vmatmul.mubr.bf16.gmra.mrb[0].mxu0 %v715
        %v1345 = vpop.f32.mrb[0].mxu0
        %v1346 = vadd.f32 %v1306, %v1345
        %v1347 = vpop.f32.mrb[0].mxu0
        %v1348 = vpop.f32.mrb[0].mxu0
        %v1349 = vpop.f32.mrb[0].mxu0
        %1350 = vdwg.mxu0
        %1351 = vmatprep.subr.bf16.mxu0 0
        %1352 = vmatpush1.bf16.msra.mxu0 %v1151
        %1353 = vmatprep.subr.bf16.mxu0 0
        %1354 = vmatpush1.bf16.msra.mxu0 %v1152
        %1355 = vmatprep.subr.bf16.mxu0 0
        %1356 = vmatpush1.bf16.msra.mxu0 %v1153
        %1357 = vmatprep.subr.bf16.mxu0 0
        %1358 = vmatpush1.bf16.msra.mxu0 %v1154
        %1359 = vmatprep.subr.bf16.mxu0 0
        %1360 = vmatpush1.bf16.msra.mxu0 %v1155
        %1361 = vmatprep.subr.bf16.mxu0 0
        %1362 = vmatpush1.bf16.msra.mxu0 %v1156
        %1363 = vmatprep.subr.bf16.mxu0 0
        %1364 = vmatpush1.bf16.msra.mxu0 %v1157
        %1365 = vmatprep.subr.bf16.mxu0 0
        %1366 = vmatpush1.bf16.msra.mxu0 %v1158
        %1367 = vmatprep.subr.bf16.mxu0 0
        %1368 = vmatpush1.bf16.msra.mxu0 %v1159
        %1369 = vmatprep.subr.bf16.mxu0 0
        %1370 = vmatpush1.bf16.msra.mxu0 %v1160
        %1371 = vmatprep.subr.bf16.mxu0 0
        %1372 = vmatpush1.bf16.msra.mxu0 %v1161
        %1373 = vmatprep.subr.bf16.mxu0 0
        %1374 = vmatpush1.bf16.msra.mxu0 %v1162
        %1375 = vmatprep.subr.bf16.mxu0 0
        %1376 = vmatpush1.bf16.msra.mxu0 %v1163
        %1377 = vmatprep.subr.bf16.mxu0 0
        %1378 = vmatpush1.bf16.msra.mxu0 %v1164
        %1379 = vmatprep.subr.bf16.mxu0 0
        %1380 = vmatpush1.bf16.msra.mxu0 %v1165
        %1381 = vmatprep.subr.bf16.mxu0 0
        %1382 = vmatpush1.bf16.msra.mxu0 %v1166
        %1383 = vmatprep.mubr.bf16.mxu0 %v718
        %1384 = vmatmul.mubr.bf16.gmra.mrb[0].mxu0 %v717
        %v1385 = vpop.f32.mrb[0].mxu0
        %v1386 = vadd.f32 %v1346, %v1385
        %v1387 = vpop.f32.mrb[0].mxu0
        %v1388 = vpop.f32.mrb[0].mxu0
        %v1389 = vpop.f32.mrb[0].mxu0
        %1390 = vdwg.mxu0
        %v1391 = vld [vmem:[#allocation5] sm:$0x3]
        %v1392 = vadd.f32 %v1391, %v1386
        %vm1393 = vcmask 345088
        %1394 = vst.msk [vmem:[#allocation5] sm:$0x3] %vm1393, %v1392
        // Predicated region
        $region45: #{head.1} parent=35 // pred_check
          %p1395 = pneg %p124
        $region46: #{head.1} parent=35 // pred_check_branch
          %1397 = sbr.rel (%p1395) target = $region48
        $region47: #{head.1} parent=35 // pred_region
          %s1399 = ssub.s32 32, 32
          %1400 = vsyncadd [#allocation3], %s1399
          %s1402 = sshll.u32 [#allocation5], 4
          %s1403 = int_to_ptr.vmem [resolvable:$true] %s1402
          %1405 = dma.vmem_to_hbm [thread:$0]  %s1403, 32, %s4, [#allocation3]
        $region48: #{head.1} parent=35 // pred_fallthru
          _
        // Predicated region
        $region49: #{head.1} parent=35 // pred_check
          %p1406 = pneg %p124
        $region50: #{head.1} parent=35 // pred_check_branch
          %1408 = sbr.rel (%p1406) target = $region52
        $region51: #{head.1} parent=35 // pred_region
          %1409 = dma.done [#allocation3], 32
        $region52: #{head.1} parent=35 // pred_fallthru
          _
      $region36: #{head.1} parent=5 // pred_fallthru
        _
      %p1410 = scmp.le.s32.totalorder 2, %s12
      // Predicated region
      $region53: #{head.1} parent=5 // pred_check
        %p1411 = pneg %p1410
      $region54: #{head.1} parent=5 // pred_check_branch
        %1413 = sbr.rel (%p1411) target = $region56
      $region55: #{head.1} parent=5 // pred_region
        %s1414 = ssub.s32 %s12, 2
      $region56: #{head.1} parent=5 // pred_fallthru
        _
    $region6: #{head.1} parent=1 // loop_footer
      %s16 = sadd.s32 1, %s12
    $region7: #{head.1} parent=1 // loop_footer_branch
      %11 = sbr.rel target = $region3
    $region8: #{head.1} parent=1 // loop_exit
      _
    %1415 = vsyncpa [#allocation3], 1
    %s1416 = scalar_lea.sflag [#allocation3], 1
    %1417 = vsyncpa %s1416, 1
    %1418 = vsyncpa [#allocation4], 1
    %s1419 = scalar_lea.sflag [#allocation4], 1
    %1420 = vsyncpa %s1419, 1

</llo_original>
